<compile_context>
chip_gen: v7x
topology: tpu7x:2x2x1
jax: 0.10.0
libtpu: 0.0.40
codegen_flags: <defaults>
</compile_context>

<pallas_src>
import jax
import jax.numpy as jnp
from jax.experimental import pallas as pl
from jax.experimental.pallas import tpu as pltpu

_LANES = 128
_SUBLANES = 8
_NUM_CLASSES = 4


def _round_up(x, m):
    return (x + m - 1) // m * m


def mlp_kernel(w_ref, t_ref, l_ref, w1_ref, b1_ref, w2_ref, b2_ref,
               o_ref, x_sc):
    """Fused concat + linear1 + tanh + linear2 + softmax, one 24-row pass.

    All weights/biases are lane-padded to multiples of 128 by the wrapper.
    Padded hidden columns are zero (tanh(0)=0, zero w2 rows) and padded
    output columns carry a -1e30 bias, so exp(logit - max) is exactly 0 for
    them and they drop out of the softmax sum.
    """
    bw = w_ref.shape[0]
    bt = t_ref.shape[0]
    bl = l_ref.shape[0]

    # Stage w/t/l into one contiguous (N, D) VMEM slab.  Offsets are static
    # and 8-row aligned -> unmasked full-sublane stores, no HBM concat.
    x_sc[0:bw, :] = w_ref[...]
    x_sc[bw:bw + bt, :] = t_ref[...]
    x_sc[bw + bt:bw + bt + bl, :] = l_ref[...]
    x = x_sc[...]                                        # (N, D)

    # NOTE (v6e/v7x): once H/D scale up, cast x/w1 and h/w2 to bf16 here
    # (keeping preferred_element_type=f32) to avoid multi-pass f32 MXU
    # emulation; elementwise math must stay f32 (v5e VPU/EUP have no bf16).
    h = jnp.tanh(
        jnp.dot(x, w1_ref[...], preferred_element_type=jnp.float32)
        + b1_ref[...])                                   # (N, Hp)
    logits = (jnp.dot(h, w2_ref[...], preferred_element_type=jnp.float32)
              + b2_ref[...])                             # (N, Op)

    m = jnp.max(logits, axis=-1, keepdims=True)
    e = jnp.exp(logits - m)              # padded cols: -1e30 bias -> exactly 0
    s = jnp.sum(e, axis=-1, keepdims=True)
    # Exact divide so each row sums to 1 to f32 rounding (the approx EUP
    # reciprocal broke the sum-to-1 guarantee; the divide is negligible here).
    o_ref[...] = e / s                                   # lane-dense (N, 128)


def mlp_forward(w, t, l, padded):
    """w/t/l: (Bi, D) f32; padded params from pad_params().

    Returns the lane-dense (N, 128) probability slab; slice [:, :4] at the
    point of use (done inside the jitted mlperceptron_apply below).
    """
    w1, b1, w2, b2 = padded["w1"], padded["b1"], padded["w2"], padded["b2"]
    d, hp = w1.shape
    op = w2.shape[1]
    for band in (w, t, l):
        # Keep every band a multiple of 8 rows: the staging copies and the
        # output store stay unmasked, sublane-aligned. Pad rows if violated.
        assert band.shape[0] % _SUBLANES == 0, "band rows must be multiple of 8"
        assert band.shape[1] == d
    n = w.shape[0] + t.shape[0] + l.shape[0]

    return pl.pallas_call(
        mlp_kernel,
        out_shape=jax.ShapeDtypeStruct((n, op), jnp.float32),
        in_specs=[
            pl.BlockSpec(w.shape, lambda: (0, 0)),
            pl.BlockSpec(t.shape, lambda: (0, 0)),
            pl.BlockSpec(l.shape, lambda: (0, 0)),
            pl.BlockSpec((d, hp), lambda: (0, 0)),
            pl.BlockSpec((1, hp), lambda: (0, 0)),
            pl.BlockSpec((hp, op), lambda: (0, 0)),
            pl.BlockSpec((1, op), lambda: (0, 0)),
        ],
        out_specs=pl.BlockSpec((n, op), lambda: (0, 0)),
        scratch_shapes=[pltpu.VMEM((n, d), jnp.float32)],
    )(w, t, l, w1, b1, w2, b2)


@jax.jit
def mlperceptron_apply(padded_params, w, t, l):
    """Jitted end-to-end so the [:, :4] slice fuses with the pallas_call
    instead of being a standalone dispatch."""
    out_padded = mlp_forward(w.astype(jnp.float32), t.astype(jnp.float32),
                             l.astype(jnp.float32), padded_params)
    return out_padded[:, :_NUM_CLASSES]


def init_params(key, input_dim, hidden_dim, out_dim=_NUM_CLASSES):
    """nn.Linear-style U(-1/sqrt(fan_in), 1/sqrt(fan_in)) init, (in,out) layout."""
    k1, k2, k3, k4 = jax.random.split(key, 4)
    bound1 = 1.0 / jnp.sqrt(jnp.float32(input_dim))
    bound2 = 1.0 / jnp.sqrt(jnp.float32(hidden_dim))
    return {
        "w1": jax.random.uniform(k1, (input_dim, hidden_dim), jnp.float32,
                                 -bound1, bound1),
        "b1": jax.random.uniform(k2, (1, hidden_dim), jnp.float32,
                                 -bound1, bound1),
        "w2": jax.random.uniform(k3, (hidden_dim, out_dim), jnp.float32,
                                 -bound2, bound2),
        "b2": jax.random.uniform(k4, (1, out_dim), jnp.float32,
                                 -bound2, bound2),
    }


def pad_params(params):
    """One-time lane padding: hidden -> mult of 128, output -> 128 lanes.

    Padded hidden columns are zero (tanh(0)=0 and their w2 rows are zero, so
    they contribute nothing).  Padded output columns get bias -1e30 so the
    in-kernel softmax assigns them exactly zero probability.  Padded w2
    columns MUST stay exactly zero for the -1e30 trick to remain sound.
    """
    w1, b1, w2, b2 = params["w1"], params["b1"], params["w2"], params["b2"]
    d, h = w1.shape
    o = w2.shape[1]
    hp = _round_up(h, _LANES)
    op = _round_up(max(o, _LANES), _LANES)
    return {
        "w1": jnp.zeros((d, hp), jnp.float32).at[:, :h].set(w1),
        "b1": jnp.zeros((1, hp), jnp.float32).at[:, :h].set(b1),
        "w2": jnp.zeros((hp, op), jnp.float32).at[:h, :o].set(w2),
        "b2": jnp.full((1, op), -1e30, jnp.float32).at[:, :o].set(b2),
    }


if __name__ == "__main__":
    key = jax.random.PRNGKey(0)
    kp, kw, kt, kl = jax.random.split(key, 4)

    input_dim = 32
    hidden_dim = 32
    B = 8  # rows per input tensor; N = 3*B = 24 (each band 8-row aligned)

    raw = init_params(kp, input_dim, hidden_dim)
    padded = pad_params(raw)

    w = jax.random.normal(kw, (B, input_dim), jnp.float32)
    t = jax.random.normal(kt, (B, input_dim), jnp.float32)
    l = jax.random.normal(kl, (B, input_dim), jnp.float32)

    out = mlperceptron_apply(padded, w, t, l)
    out = jax.block_until_ready(out)

    # Reference in plain JAX with the UNPADDED params.
    x = jnp.concatenate([w, t, l], axis=0)
    ref = jax.nn.softmax(
        jnp.tanh(x @ raw["w1"] + raw["b1"]) @ raw["w2"] + raw["b2"], axis=-1)

    assert out.shape == (3 * B, _NUM_CLASSES)
    assert jnp.allclose(out, ref, atol=1e-4, rtol=1e-4)
    assert jnp.allclose(jnp.sum(out, axis=-1), 1.0, atol=1e-4)

    print("KERNEL_OK")
</pallas_src>

<mosaic_0001>
module attributes {stable_mosaic.version = 11 : i64} {
  func.func @mlp_kernel(%arg0: memref<8x32xf32, #tpu.memory_space<vmem>>, %arg1: memref<8x32xf32, #tpu.memory_space<vmem>>, %arg2: memref<8x32xf32, #tpu.memory_space<vmem>>, %arg3: memref<32x128xf32, #tpu.memory_space<vmem>>, %arg4: memref<1x128xf32, #tpu.memory_space<vmem>>, %arg5: memref<128x128xf32, #tpu.memory_space<vmem>>, %arg6: memref<1x128xf32, #tpu.memory_space<vmem>>, %arg7: memref<24x128xf32, #tpu.memory_space<vmem>>, %arg8: memref<24x32xf32, #tpu.memory_space<vmem>>) attributes {dimension_semantics = [], scalar_prefetch = 0 : i64, scratch_operands = 1 : i64, tpu.core_type = #tpu.core_type<tc>} {
    %c0 = arith.constant 0 : index
    %c0_0 = arith.constant 0 : index
    %0 = vector.load %arg0[%c0, %c0_0] : memref<8x32xf32, #tpu.memory_space<vmem>>, vector<8x32xf32>
    %c0_1 = arith.constant 0 : index
    %c0_2 = arith.constant 0 : index
    %1 = vector.load %arg8[%c0_1, %c0_2] : memref<24x32xf32, #tpu.memory_space<vmem>>, vector<8x32xf32>
    tpu.vector_store %arg8[%c0_1, %c0_2], %0 {strides = array<i32>} : memref<24x32xf32, #tpu.memory_space<vmem>>, vector<8x32xf32>,
    %c0_3 = arith.constant 0 : index
    %c0_4 = arith.constant 0 : index
    %2 = vector.load %arg1[%c0_3, %c0_4] : memref<8x32xf32, #tpu.memory_space<vmem>>, vector<8x32xf32>
    %c8 = arith.constant 8 : index
    %c0_5 = arith.constant 0 : index
    %3 = vector.load %arg8[%c8, %c0_5] : memref<24x32xf32, #tpu.memory_space<vmem>>, vector<8x32xf32>
    tpu.vector_store %arg8[%c8, %c0_5], %2 {strides = array<i32>} : memref<24x32xf32, #tpu.memory_space<vmem>>, vector<8x32xf32>,
    %c0_6 = arith.constant 0 : index
    %c0_7 = arith.constant 0 : index
    %4 = vector.load %arg2[%c0_6, %c0_7] : memref<8x32xf32, #tpu.memory_space<vmem>>, vector<8x32xf32>
    %c16 = arith.constant 16 : index
    %c0_8 = arith.constant 0 : index
    %5 = vector.load %arg8[%c16, %c0_8] : memref<24x32xf32, #tpu.memory_space<vmem>>, vector<8x32xf32>
    tpu.vector_store %arg8[%c16, %c0_8], %4 {strides = array<i32>} : memref<24x32xf32, #tpu.memory_space<vmem>>, vector<8x32xf32>,
    %c0_9 = arith.constant 0 : index
    %c0_10 = arith.constant 0 : index
    %6 = vector.load %arg8[%c0_9, %c0_10] : memref<24x32xf32, #tpu.memory_space<vmem>>, vector<24x32xf32>
    %c0_11 = arith.constant 0 : index
    %c0_12 = arith.constant 0 : index
    %7 = vector.load %arg3[%c0_11, %c0_12] : memref<32x128xf32, #tpu.memory_space<vmem>>, vector<32x128xf32>
    %cst = arith.constant dense<0.000000e+00> : vector<24x128xf32>
    %8 = tpu.matmul %6, %7, %cst {dimension_numbers = #tpu.dot_dimension_numbers<[1], [0], [0], [1], [0, 0, 1, 1], [], []>} : vector<24x32xf32>, vector<32x128xf32>, vector<24x128xf32> -> vector<24x128xf32>
    %c0_13 = arith.constant 0 : index
    %c0_14 = arith.constant 0 : index
    %9 = vector.load %arg4[%c0_13, %c0_14] : memref<1x128xf32, #tpu.memory_space<vmem>>, vector<1x128xf32>
    %10 = vector.broadcast %9 : vector<1x128xf32> to vector<24x128xf32>
    %11 = arith.addf %8, %10 : vector<24x128xf32>
    %12 = math.tanh %11 : vector<24x128xf32>
    %c0_15 = arith.constant 0 : index
    %c0_16 = arith.constant 0 : index
    %13 = vector.load %arg5[%c0_15, %c0_16] : memref<128x128xf32, #tpu.memory_space<vmem>>, vector<128x128xf32>
    %cst_17 = arith.constant dense<0.000000e+00> : vector<24x128xf32>
    %14 = tpu.matmul %12, %13, %cst_17 {dimension_numbers = #tpu.dot_dimension_numbers<[1], [0], [0], [1], [0, 0, 1, 1], [], []>} : vector<24x128xf32>, vector<128x128xf32>, vector<24x128xf32> -> vector<24x128xf32>
    %c0_18 = arith.constant 0 : index
    %c0_19 = arith.constant 0 : index
    %15 = vector.load %arg6[%c0_18, %c0_19] : memref<1x128xf32, #tpu.memory_space<vmem>>, vector<1x128xf32>
    %16 = vector.broadcast %15 : vector<1x128xf32> to vector<24x128xf32>
    %17 = arith.addf %14, %16 : vector<24x128xf32>
    %cst_20 = arith.constant dense<0xFF800000> : vector<24xf32>
    %18 = vector.multi_reduction <maximumf>, %17, %cst_20 [1] : vector<24x128xf32> to vector<24xf32>
    %19 = vector.shape_cast %18 : vector<24xf32> to vector<24x1xf32>
    %20 = vector.broadcast %19 : vector<24x1xf32> to vector<24x128xf32>
    %21 = arith.subf %17, %20 : vector<24x128xf32>
    %22 = math.exp %21 : vector<24x128xf32>
    %cst_21 = arith.constant dense<0.000000e+00> : vector<24xf32>
    %23 = vector.multi_reduction <add>, %22, %cst_21 [1] : vector<24x128xf32> to vector<24xf32>
    %24 = vector.shape_cast %23 : vector<24xf32> to vector<24x1xf32>
    %25 = vector.broadcast %24 : vector<24x1xf32> to vector<24x128xf32>
    %26 = arith.divf %22, %25 : vector<24x128xf32>
    %c0_22 = arith.constant 0 : index
    %c0_23 = arith.constant 0 : index
    %27 = vector.load %arg7[%c0_22, %c0_23] : memref<24x128xf32, #tpu.memory_space<vmem>>, vector<24x128xf32>
    tpu.vector_store %arg7[%c0_22, %c0_23], %26 {strides = array<i32>} : memref<24x128xf32, #tpu.memory_space<vmem>>, vector<24x128xf32>,
    return
  }
}

</mosaic_0001>

<llo_original>
// kernel: mlperceptron_apply.1
$region0: #{mlperceptron_apply.1}
  #allocation0 [shape = 'u32[]', space=smem, size = 0x4, offset = 0x4, fixed_abs, tag = 'smem constant byte address 0x4 - core index']
  #allocation1 [shape = 'u32[144,128]{1,0:T(1,128)}', space=vmem, size = 0x12000, scoped, tag = 'internal scratch']
  #allocation2 [shape = 'f32[24,32]{1,0:T(8,128)}', space=vmem, size = 0x3000, scoped, tag = 'scratch operand']
  %s0 = inlined_call_operand.vmem [shape: f32[8,32], index: 0, kind: input, shape index: {}]
  %s1 = inlined_call_operand.vmem [shape: f32[8,32], index: 1, kind: input, shape index: {}]
  %s2 = inlined_call_operand.hbm [shape: f32[8,32], index: 2, kind: input, shape index: {}]
  %s3 = inlined_call_operand.hbm [shape: f32[32,128], index: 3, kind: input, shape index: {}]
  %s4 = inlined_call_operand.hbm [shape: f32[1,128], index: 4, kind: input, shape index: {}]
  %s5 = inlined_call_operand.hbm [shape: f32[128,128], index: 5, kind: input, shape index: {}]
  %s6 = inlined_call_operand.vmem [shape: f32[1,128], index: 6, kind: input, shape index: {}]
  %s7 = inlined_call_operand.vmem [shape: f32[24,128], index: 7, kind: output, shape index: {}]
  %s8 = sld [smem:[#allocation0]]
  $region54: #{mlperceptron_apply.1} parent=0
    _
  %s10 = ssub.s32 1, %s8
  %s11 = scalar_select 0, %s10, %s8
  $region1: #{mlperceptron_apply.1} parent=0
    #allocation3 [shape = 'u8[4096]{0}', space=vmem, size = 0x1000, scoped, tag = 'input window, operand 2, single buffered']
    #allocation4 [shape = 's32[1]{0}', space=sflag, size = 0x4, scoped, tag = 'scoped memory for mlperceptron_apply.1']
    #allocation5 [shape = 'u8[16384]{0}', space=vmem, size = 0x4000, scoped, tag = 'input window, operand 3, single buffered']
    #allocation6 [shape = 's32[1]{0}', space=sflag, size = 0x4, scoped, tag = 'scoped memory for mlperceptron_apply.1']
    #allocation7 [shape = 'u8[512]{0}', space=vmem, size = 0x400, scoped, tag = 'input window, operand 4, single buffered']
    #allocation8 [shape = 'u8[65536]{0}', space=vmem, size = 0x10000, scoped, tag = 'input window, operand 5, single buffered']
    #allocation9 [shape = 's32[1]{0}', space=sflag, size = 0x4, scoped, tag = 'scoped memory for mlperceptron_apply.1']
    %12 = vsyncpa [#allocation4], 0
    %13 = vsyncpa [#allocation6], 0
    %14 = vsyncpa [#allocation9], 0
    // Predicated region
    $region2: #{mlperceptron_apply.1} parent=1 // pred_check
      _
    $region3: #{mlperceptron_apply.1} parent=1 // pred_check_branch
      %16 = sbr.rel (0) target = $region5
    $region4: #{mlperceptron_apply.1} parent=1 // pred_region
      _
    $region5: #{mlperceptron_apply.1} parent=1 // pred_fallthru
      _
    // Predicated region
    $region6: #{mlperceptron_apply.1} parent=1 // pred_check
      _
    $region7: #{mlperceptron_apply.1} parent=1 // pred_check_branch
      %18 = sbr.rel (0) target = $region9
    $region8: #{mlperceptron_apply.1} parent=1 // pred_region
      _
    $region9: #{mlperceptron_apply.1} parent=1 // pred_fallthru
      _
    // Predicated region
    $region10: #{mlperceptron_apply.1} parent=1 // pred_check
      _
    $region11: #{mlperceptron_apply.1} parent=1 // pred_check_branch
      %20 = sbr.rel (0) target = $region13
    $region12: #{mlperceptron_apply.1} parent=1 // pred_region
      %s22 = ssub.s32 128, 128
      %23 = vsyncadd [#allocation4], %s22
      %s25 = sshll.u32 [#allocation3], 4
      %s26 = int_to_ptr.vmem [resolvable:$true] %s25
      %28 = dma.hbm_to_vmem [thread:$0]  %s2, 128, %s26, [#allocation4]
    $region13: #{mlperceptron_apply.1} parent=1 // pred_fallthru
      _
    // Predicated region
    $region14: #{mlperceptron_apply.1} parent=1 // pred_check
      _
    $region15: #{mlperceptron_apply.1} parent=1 // pred_check_branch
      %30 = sbr.rel (0) target = $region17
    $region16: #{mlperceptron_apply.1} parent=1 // pred_region
      %s32 = ssub.s32 512, 512
      %33 = vsyncadd [#allocation6], %s32
      %s34 = sshll.u32 [#allocation5], 4
      %s35 = int_to_ptr.vmem [resolvable:$true] %s34
      %40 = dma.hbm_to_vmem [thread:$0]  %s3, 512, %s35, [#allocation6], 128, 128, 8
    $region17: #{mlperceptron_apply.1} parent=1 // pred_fallthru
      _
    // Predicated region
    $region18: #{mlperceptron_apply.1} parent=1 // pred_check
      _
    $region19: #{mlperceptron_apply.1} parent=1 // pred_check_branch
      %42 = sbr.rel (0) target = $region21
    $region20: #{mlperceptron_apply.1} parent=1 // pred_region
      %s44 = ssub.s32 16, 16
      %45 = vsyncadd [#allocation6], %s44
      %s47 = sshll.u32 [#allocation7], 4
      %s48 = int_to_ptr.vmem [resolvable:$true] %s47
      %50 = dma.hbm_to_vmem [thread:$0]  %s4, 16, %s48, [#allocation6]
    $region21: #{mlperceptron_apply.1} parent=1 // pred_fallthru
      _
    // Predicated region
    $region22: #{mlperceptron_apply.1} parent=1 // pred_check
      _
    $region23: #{mlperceptron_apply.1} parent=1 // pred_check_branch
      %52 = sbr.rel (0) target = $region25
    $region24: #{mlperceptron_apply.1} parent=1 // pred_region
      %s54 = ssub.s32 2048, 2048
      %55 = vsyncadd [#allocation9], %s54
      %s56 = sshll.u32 [#allocation8], 4
      %s57 = int_to_ptr.vmem [resolvable:$true] %s56
      %62 = dma.hbm_to_vmem [thread:$0]  %s5, 2048, %s57, [#allocation9], 128, 128, 8
    $region25: #{mlperceptron_apply.1} parent=1 // pred_fallthru
      _
    // Predicated region
    $region26: #{mlperceptron_apply.1} parent=1 // pred_check
      _
    $region27: #{mlperceptron_apply.1} parent=1 // pred_check_branch
      %64 = sbr.rel (0) target = $region29
    $region28: #{mlperceptron_apply.1} parent=1 // pred_region
      _
    $region29: #{mlperceptron_apply.1} parent=1 // pred_fallthru
      _
    // Predicated region
    $region30: #{mlperceptron_apply.1} parent=1 // pred_check
      _
    $region31: #{mlperceptron_apply.1} parent=1 // pred_check_branch
      %66 = sbr.rel (0) target = $region33
    $region32: #{mlperceptron_apply.1} parent=1 // pred_region
      %67 = dma.done [#allocation4], 128
    $region33: #{mlperceptron_apply.1} parent=1 // pred_fallthru
      _
    // Predicated region
    $region34: #{mlperceptron_apply.1} parent=1 // pred_check
      _
    $region35: #{mlperceptron_apply.1} parent=1 // pred_check_branch
      %69 = sbr.rel (0) target = $region37
    $region36: #{mlperceptron_apply.1} parent=1 // pred_region
      %70 = dma.done [#allocation6], 512
    $region37: #{mlperceptron_apply.1} parent=1 // pred_fallthru
      _
    // Predicated region
    $region38: #{mlperceptron_apply.1} parent=1 // pred_check
      _
    $region39: #{mlperceptron_apply.1} parent=1 // pred_check_branch
      %72 = sbr.rel (0) target = $region41
    $region40: #{mlperceptron_apply.1} parent=1 // pred_region
      %73 = dma.done [#allocation6], 16
    $region41: #{mlperceptron_apply.1} parent=1 // pred_fallthru
      _
    // Predicated region
    $region42: #{mlperceptron_apply.1} parent=1 // pred_check
      _
    $region43: #{mlperceptron_apply.1} parent=1 // pred_check_branch
      %75 = sbr.rel (0) target = $region45
    $region44: #{mlperceptron_apply.1} parent=1 // pred_region
      %76 = dma.done [#allocation9], 2048
    $region45: #{mlperceptron_apply.1} parent=1 // pred_fallthru
      _
    %v77 = vld [vmem:[%s0] sm:$0xff]
    %vm78 = vcmask 261120
    %79 = vst.msk [vmem:[#allocation2] sm:$0xff] %vm78, %v77
    %v80 = vld [vmem:[%s1] sm:$0xff]
    %81 = vst.msk [vmem:[#allocation2 + $0x8] sm:$0xff] %vm78, %v80
    %v82 = vld [vmem:[#allocation3] sm:$0xff]
    %83 = vst.msk [vmem:[#allocation2 + $0x10] sm:$0xff] %vm78, %v82
    %v84 = vld [vmem:[#allocation2] sm:$0xff]
    %v85 = vld [vmem:[#allocation2 + $0x8] sm:$0xff]
    %v86 = vld [vmem:[#allocation2 + $0x10] sm:$0xff]
    %v87 = vld [vmem:[#allocation5] sm:$0xff]
    %v88 = vld [vmem:[#allocation5 + $0x8] sm:$0xff]
    %v89 = vld [vmem:[#allocation5 + $0x10] sm:$0xff]
    %v90 = vld [vmem:[#allocation5 + $0x18] sm:$0xff]
    %v91 = vld [vmem:[#allocation7] sm:$0x1]
    %v93 = vlaneseq
    %v94 = vshrl.u32 %v93, 7
    %v95 = vsub.s32 0, %v94
    %v96 = vrot.slane %v91, %v95
    %v99 = vsel %vm78, %v84, 0
    %v102 = vsel %vm78, %v85, 0
    %v105 = vsel %vm78, %v86, 0
    %107 = vmatprep.subr.mxu0 0.0
    %108 = vmatpush1.msra.mxu0 %v87
    %109 = vmatprep.subr.mxu0 0.0
    %110 = vmatpush1.msra.mxu0 %v88
    %111 = vmatprep.subr.mxu0 0.0
    %112 = vmatpush1.msra.mxu0 %v89
    %113 = vmatprep.subr.mxu0 0.0
    %114 = vmatpush1.msra.mxu0 %v90
    %115 = vmatprep.subr.mxu0 0.0
    %116 = vmatpush1.msra.mxu0 0.0
    %117 = vmatprep.subr.mxu0 0.0
    %118 = vmatpush1.msra.mxu0 0.0
    %119 = vmatprep.subr.mxu0 0.0
    %120 = vmatpush1.msra.mxu0 0.0
    %121 = vmatprep.subr.mxu0 0.0
    %122 = vmatpush1.msra.mxu0 0.0
    %123 = vmatprep.subr.mxu0 0.0
    %124 = vmatpush1.msra.mxu0 0.0
    %125 = vmatprep.subr.mxu0 0.0
    %126 = vmatpush1.msra.mxu0 0.0
    %127 = vmatprep.subr.mxu0 0.0
    %128 = vmatpush1.msra.mxu0 0.0
    %129 = vmatprep.subr.mxu0 0.0
    %130 = vmatpush1.msra.mxu0 0.0
    %131 = vmatprep.subr.mxu0 0.0
    %132 = vmatpush1.msra.mxu0 0.0
    %133 = vmatprep.subr.mxu0 0.0
    %134 = vmatpush1.msra.mxu0 0.0
    %135 = vmatprep.subr.mxu0 0.0
    %136 = vmatpush1.msra.mxu0 0.0
    %137 = vmatprep.subr.mxu0 0.0
    %138 = vmatpush1.msra.mxu0 0.0
    %139 = vmatprep.subr.mxu0 0.0
    %140 = vmatpush1.msra.mxu0 0.0
    %141 = vmatprep.subr.mxu0 0.0
    %142 = vmatpush1.msra.mxu0 0.0
    %143 = vmatprep.subr.mxu0 0.0
    %144 = vmatpush1.msra.mxu0 0.0
    %145 = vmatprep.subr.mxu0 0.0
    %146 = vmatpush1.msra.mxu0 0.0
    %147 = vmatprep.subr.mxu0 0.0
    %148 = vmatpush1.msra.mxu0 0.0
    %149 = vmatprep.subr.mxu0 0.0
    %150 = vmatpush1.msra.mxu0 0.0
    %151 = vmatprep.subr.mxu0 0.0
    %152 = vmatpush1.msra.mxu0 0.0
    %153 = vmatprep.subr.mxu0 0.0
    %154 = vmatpush1.msra.mxu0 0.0
    %155 = vmatprep.subr.mxu0 0.0
    %156 = vmatpush1.msra.mxu0 0.0
    %157 = vmatprep.subr.mxu0 0.0
    %158 = vmatpush1.msra.mxu0 0.0
    %159 = vmatprep.subr.mxu0 0.0
    %160 = vmatpush1.msra.mxu0 0.0
    %161 = vmatprep.subr.mxu0 0.0
    %162 = vmatpush1.msra.mxu0 0.0
    %163 = vmatprep.subr.mxu0 0.0
    %164 = vmatpush1.msra.mxu0 0.0
    %165 = vmatprep.subr.mxu0 0.0
    %166 = vmatpush1.msra.mxu0 0.0
    %167 = vmatprep.subr.mxu0 0.0
    %168 = vmatpush1.msra.mxu0 0.0
    %169 = vmatprep.subr.mxu0 0.0
    %170 = vmatpush1.msra.mxu0 0.0
    %171 = vmatprep.mubr.f32.mxu0 0.0
    %172 = vmatmul.mubr.f32.gmra.mrb[0].mxu0 %v99
    %v173 = vpop.f32.mrb[0].mxu0
    %v174 = vadd.f32 %v96, %v173
    %v175 = vpop.f32.mrb[0].mxu0
    %176 = vmatprep.mubr.f32.mxu0 0.0
    %177 = vmatmul.mubr.f32.gmra.mrb[0].mxu0 %v102
    %v178 = vpop.f32.mrb[0].mxu0
    %v179 = vadd.f32 %v96, %v178
    %v180 = vpop.f32.mrb[0].mxu0
    %181 = vmatprep.mubr.f32.mxu0 0.0
    %182 = vmatmul.mubr.f32.gmra.mrb[0].mxu0 %v105
    %v183 = vpop.f32.mrb[0].mxu0
    %v184 = vadd.f32 %v96, %v183
    %v185 = vpop.f32.mrb[0].mxu0
    %186 = vdwg.mxu0
    %v187 = vtanh.pop %v174
    %v188 = vtanh.pop %v179
    %v189 = vtanh.pop %v184
    %v190 = vld [vmem:[#allocation8] sm:$0xff]
    %v191 = vld [vmem:[#allocation8 + $0x8] sm:$0xff]
    %v192 = vld [vmem:[#allocation8 + $0x10] sm:$0xff]
    %v193 = vld [vmem:[#allocation8 + $0x18] sm:$0xff]
    %v194 = vld [vmem:[#allocation8 + $0x20] sm:$0xff]
    %v195 = vld [vmem:[#allocation8 + $0x28] sm:$0xff]
    %v196 = vld [vmem:[#allocation8 + $0x30] sm:$0xff]
    %v197 = vld [vmem:[#allocation8 + $0x38] sm:$0xff]
    %v198 = vld [vmem:[#allocation8 + $0x40] sm:$0xff]
    %v199 = vld [vmem:[#allocation8 + $0x48] sm:$0xff]
    %v200 = vld [vmem:[#allocation8 + $0x50] sm:$0xff]
    %v201 = vld [vmem:[#allocation8 + $0x58] sm:$0xff]
    %v202 = vld [vmem:[#allocation8 + $0x60] sm:$0xff]
    %v203 = vld [vmem:[#allocation8 + $0x68] sm:$0xff]
    %v204 = vld [vmem:[#allocation8 + $0x70] sm:$0xff]
    %v205 = vld [vmem:[#allocation8 + $0x78] sm:$0xff]
    %v206 = vld [vmem:[%s6] sm:$0x1]
    %v208 = vlaneseq
    %v209 = vshrl.u32 %v208, 7
    %v210 = vsub.s32 0, %v209
    %v211 = vrot.slane %v206, %v210
    %213 = vmatprep.subr.mxu0 0.0
    %214 = vmatpush1.msra.mxu0 %v190
    %215 = vmatprep.subr.mxu0 0.0
    %216 = vmatpush1.msra.mxu0 %v191
    %217 = vmatprep.subr.mxu0 0.0
    %218 = vmatpush1.msra.mxu0 %v192
    %219 = vmatprep.subr.mxu0 0.0
    %220 = vmatpush1.msra.mxu0 %v193
    %221 = vmatprep.subr.mxu0 0.0
    %222 = vmatpush1.msra.mxu0 %v194
    %223 = vmatprep.subr.mxu0 0.0
    %224 = vmatpush1.msra.mxu0 %v195
    %225 = vmatprep.subr.mxu0 0.0
    %226 = vmatpush1.msra.mxu0 %v196
    %227 = vmatprep.subr.mxu0 0.0
    %228 = vmatpush1.msra.mxu0 %v197
    %229 = vmatprep.subr.mxu0 0.0
    %230 = vmatpush1.msra.mxu0 %v198
    %231 = vmatprep.subr.mxu0 0.0
    %232 = vmatpush1.msra.mxu0 %v199
    %233 = vmatprep.subr.mxu0 0.0
    %234 = vmatpush1.msra.mxu0 %v200
    %235 = vmatprep.subr.mxu0 0.0
    %236 = vmatpush1.msra.mxu0 %v201
    %237 = vmatprep.subr.mxu0 0.0
    %238 = vmatpush1.msra.mxu0 %v202
    %239 = vmatprep.subr.mxu0 0.0
    %240 = vmatpush1.msra.mxu0 %v203
    %241 = vmatprep.subr.mxu0 0.0
    %242 = vmatpush1.msra.mxu0 %v204
    %243 = vmatprep.subr.mxu0 0.0
    %244 = vmatpush1.msra.mxu0 %v205
    %245 = vmatprep.subr.mxu0 0.0
    %246 = vmatpush1.msra.mxu0 0.0
    %247 = vmatprep.subr.mxu0 0.0
    %248 = vmatpush1.msra.mxu0 0.0
    %249 = vmatprep.subr.mxu0 0.0
    %250 = vmatpush1.msra.mxu0 0.0
    %251 = vmatprep.subr.mxu0 0.0
    %252 = vmatpush1.msra.mxu0 0.0
    %253 = vmatprep.subr.mxu0 0.0
    %254 = vmatpush1.msra.mxu0 0.0
    %255 = vmatprep.subr.mxu0 0.0
    %256 = vmatpush1.msra.mxu0 0.0
    %257 = vmatprep.subr.mxu0 0.0
    %258 = vmatpush1.msra.mxu0 0.0
    %259 = vmatprep.subr.mxu0 0.0
    %260 = vmatpush1.msra.mxu0 0.0
    %261 = vmatprep.subr.mxu0 0.0
    %262 = vmatpush1.msra.mxu0 0.0
    %263 = vmatprep.subr.mxu0 0.0
    %264 = vmatpush1.msra.mxu0 0.0
    %265 = vmatprep.subr.mxu0 0.0
    %266 = vmatpush1.msra.mxu0 0.0
    %267 = vmatprep.subr.mxu0 0.0
    %268 = vmatpush1.msra.mxu0 0.0
    %269 = vmatprep.subr.mxu0 0.0
    %270 = vmatpush1.msra.mxu0 0.0
    %271 = vmatprep.subr.mxu0 0.0
    %272 = vmatpush1.msra.mxu0 0.0
    %273 = vmatprep.subr.mxu0 0.0
    %274 = vmatpush1.msra.mxu0 0.0
    %275 = vmatprep.subr.mxu0 0.0
    %276 = vmatpush1.msra.mxu0 0.0
    %277 = vmatprep.mubr.f32.mxu0 0.0
    %278 = vmatmul.mubr.f32.gmra.mrb[0].mxu0 %v187
    %v279 = vpop.f32.mrb[0].mxu0
    %v280 = vadd.f32 %v211, %v279
    %v281 = vpop.f32.mrb[0].mxu0
    %282 = vmatprep.mubr.f32.mxu0 0.0
    %283 = vmatmul.mubr.f32.gmra.mrb[0].mxu0 %v188
    %v284 = vpop.f32.mrb[0].mxu0
    %v285 = vadd.f32 %v211, %v284
    %v286 = vpop.f32.mrb[0].mxu0
    %287 = vmatprep.mubr.f32.mxu0 0.0
    %288 = vmatmul.mubr.f32.gmra.mrb[0].mxu0 %v189
    %v289 = vpop.f32.mrb[0].mxu0
    %v290 = vadd.f32 %v211, %v289
    %v291 = vpop.f32.mrb[0].mxu0
    %292 = vdwg.mxu0
    %293 = vmax.xlane.f32.xlu0 %v280
    %v294 = vpop.xlane.xlu0 %293
    %295 = vmax.xlane.f32.xlu0 %v285
    %v296 = vpop.xlane.xlu0 %295
    %297 = vmax.xlane.f32.xlu0 %v290
    %v298 = vpop.xlane.xlu0 %297
    %v299 = vsub.f32 %v280, %v294
    %v300 = vsub.f32 %v285, %v296
    %v301 = vsub.f32 %v290, %v298
    %v302 = vmul.f32 %v299, 1.442695
    %v303 = vpow.pop %v302
    %v304 = vmul.f32 %v300, 1.442695
    %v305 = vpow.pop %v304
    %v306 = vmul.f32 %v301, 1.442695
    %v307 = vpow.pop %v306
    %308 = vadd.xlane.f32.xlu0 %v303
    %v309 = vpop.xlane.xlu0 %308
    %310 = vadd.xlane.f32.xlu0 %v305
    %v311 = vpop.xlane.xlu0 %310
    %312 = vadd.xlane.f32.xlu0 %v307
    %v313 = vpop.xlane.xlu0 %312
    %v314 = vrcp.pop %v309
    %v315 = vmul.f32 %v303, %v314
    %v316 = vrcp.pop %v311
    %v317 = vmul.f32 %v305, %v316
    %v318 = vrcp.pop %v313
    %v319 = vmul.f32 %v307, %v318
    %320 = vst [vmem:[%s7] sm:$0xff] %v315
    %321 = vst [vmem:[%s7 + $0x8] sm:$0xff] %v317
    %322 = vst [vmem:[%s7 + $0x10] sm:$0xff] %v319
    // Predicated region
    $region46: #{mlperceptron_apply.1} parent=1 // pred_check
      _
    $region47: #{mlperceptron_apply.1} parent=1 // pred_check_branch
      %324 = sbr.rel (0) target = $region49
    $region48: #{mlperceptron_apply.1} parent=1 // pred_region
      _
    $region49: #{mlperceptron_apply.1} parent=1 // pred_fallthru
      _
    // Predicated region
    $region50: #{mlperceptron_apply.1} parent=1 // pred_check
      _
    $region51: #{mlperceptron_apply.1} parent=1 // pred_check_branch
      %326 = sbr.rel (0) target = $region53
    $region52: #{mlperceptron_apply.1} parent=1 // pred_region
      _
    $region53: #{mlperceptron_apply.1} parent=1 // pred_fallthru
      _
    %327 = vsyncpa [#allocation4], 1
    %328 = vsyncpa [#allocation6], 1
    %329 = vsyncpa [#allocation9], 1

</llo_original>
